<compile_context>
chip_gen: v7x
topology: tpu7x:2x2x1
jax: 0.10.0
libtpu: 0.0.40
codegen_flags: <defaults>
</compile_context>

<pallas_src>
import jax
import jax.numpy as jnp
from jax.experimental import pallas as pl
from jax.experimental.pallas import tpu as pltpu


_TM_MAX = 2048          # max batch tile (amortizes ~0.35 us per grid step)
_MEGACORE_SPLIT = 512   # above this batch size, force >=2 grid steps (v7x 2 TCs)
_LANE = 128             # TPU lane width


def _round_up(x, m):
    return ((x + m - 1) // m) * m


def _vmem_limit_bytes():
    """~3/4 of physical VMEM: ~48 MiB on v7x (64 MiB), ~96 MiB on v5e/v6e (128 MiB)."""
    try:
        cap = int(pltpu.get_tpu_info().vmem_capacity_bytes)
    except Exception:
        cap = 64 * 1024 * 1024  # conservative (v7x-sized) fallback
    return min(cap * 3 // 4, 96 * 1024 * 1024)


def _nn_kernel(x_ref, w_ref, b_ref, out_ref):
    # Single fused MXU dot (folded encoder∘decoder) + bias.
    # bf16 operands, f32 accumulation; x cast is a no-op if x is already bf16.
    x = x_ref[...].astype(jnp.bfloat16)                              # (TM, D_in)
    o = jnp.dot(x, w_ref[...], preferred_element_type=jnp.float32)  # (TM, out_pad)
    o = o + b_ref[...]                                               # broadcast (1, out_pad)
    # store only the real output columns -> unpadded HBM writeback (masked vst)
    out_ref[...] = o[:, : out_ref.shape[-1]].astype(out_ref.dtype)


def prepare_params(w1, b1, w2, b2):
    """One-time prep (outside the hot path).

    Folds the two bias-only Linear layers:
        W_eff = w1 @ w2   (f32 fold, then bf16)
        b_eff = b1 @ w2 + b2   (f32)
    and pads only the lane (N) dim of the tiny VMEM-resident weight/bias up to
    128 so the in-kernel dot is lane-dense.  The HBM output stays unpadded.

    w1: (input_dim, hidden_dim), b1: (hidden_dim,)
    w2: (hidden_dim, output_dim), b2: (output_dim,)
    """
    input_dim, _ = w1.shape
    output_dim = w2.shape[1]
    out_pad = _round_up(output_dim, _LANE)

    w_eff = jnp.dot(w1.astype(jnp.float32), w2.astype(jnp.float32))          # (in, out)
    b_eff = jnp.dot(b1.astype(jnp.float32), w2.astype(jnp.float32)) + b2.astype(jnp.float32)

    w_p = jnp.zeros((input_dim, out_pad), jnp.bfloat16)
    w_p = w_p.at[:, :output_dim].set(w_eff.astype(jnp.bfloat16))
    b_p = jnp.zeros((1, out_pad), jnp.float32)
    b_p = b_p.at[:, :output_dim].set(b_eff)
    return w_p, b_p


def nn_forward(x, w_p, b_p, output_dim):
    """x: (batch, seq_len, enc_in); (w_p, b_p) from prepare_params.
    Returns (batch, 1, output_dim) float32."""
    batch = x.shape[0]
    input_dim = x.shape[1] * x.shape[2]
    assert w_p.shape[0] == input_dim, (w_p.shape, input_dim)
    out_pad = w_p.shape[1]

    # glue: the PyTorch reshape (contiguous flatten) — metadata-only, no copy,
    # no dtype change (bf16 producers are consumed as-is).
    x2d = x.reshape(batch, input_dim)

    # batch tiling:
    #  - small batch: one full-batch tile (block == full dim is always legal)
    #  - larger batch: ~batch/2 tiles (>=2 grid steps for v7x megacore),
    #    capped at _TM_MAX and rounded to a sublane multiple of 8
    if batch <= _MEGACORE_SPLIT:
        tm = batch
    else:
        tm = min(_TM_MAX, _round_up((batch + 1) // 2, 8))
    batch_pad = _round_up(batch, tm)
    if batch_pad != batch:
        x2d = jnp.pad(x2d, ((0, batch_pad - batch), (0, 0)))

    grid = (batch_pad // tm,)

    flops = 2 * batch_pad * input_dim * out_pad
    bytes_accessed = (
        x2d.size * x2d.dtype.itemsize
        + w_p.size * 2
        + b_p.size * 4
        + batch_pad * output_dim * 4
    )

    out2d = pl.pallas_call(
        _nn_kernel,
        out_shape=jax.ShapeDtypeStruct((batch_pad, output_dim), jnp.float32),
        grid_spec=pltpu.PrefetchScalarGridSpec(
            num_scalar_prefetch=0,
            grid=grid,
            in_specs=[
                # activations: tiled along batch
                pl.BlockSpec((tm, input_dim), lambda i: (i, 0)),
                # folded weight / bias: constant block -> VMEM-resident
                pl.BlockSpec((input_dim, out_pad), lambda i: (0, 0)),
                pl.BlockSpec((1, out_pad), lambda i: (0, 0)),
            ],
            # unpadded output: last-dim block == full dim (legal), masked vst
            out_specs=pl.BlockSpec((tm, output_dim), lambda i: (i, 0)),
        ),
        compiler_params=pltpu.CompilerParams(
            dimension_semantics=("parallel",),     # megacore sharding on v7x
            vmem_limit_bytes=_vmem_limit_bytes(),  # generation-dependent budget
        ),
        cost_estimate=pl.CostEstimate(
            flops=flops, transcendentals=0, bytes_accessed=bytes_accessed),
    )(x2d, w_p, b_p)

    if batch_pad != batch:
        out2d = out2d[:batch]
    # glue: unsqueeze(1) -> (batch, 1, output_dim)
    return out2d[:, None, :]


def init_params(key, input_dim, hidden_dim, output_dim):
    """Deterministic PyTorch-style (uniform +/- 1/sqrt(fan_in)) init.
    Weights stored already transposed: (in, out)."""
    k1, k2, k3, k4 = jax.random.split(key, 4)
    lim1 = 1.0 / jnp.sqrt(jnp.float32(input_dim))
    lim2 = 1.0 / jnp.sqrt(jnp.float32(hidden_dim))
    w1 = jax.random.uniform(k1, (input_dim, hidden_dim), jnp.float32, -lim1, lim1)
    b1 = jax.random.uniform(k2, (hidden_dim,), jnp.float32, -lim1, lim1)
    w2 = jax.random.uniform(k3, (hidden_dim, output_dim), jnp.float32, -lim2, lim2)
    b2 = jax.random.uniform(k4, (output_dim,), jnp.float32, -lim2, lim2)
    return w1, b1, w2, b2


if __name__ == "__main__":
    key = jax.random.PRNGKey(0)

    batch, seq_len, enc_in = 2, 8, 4
    input_dim = seq_len * enc_in          # 32
    hidden_dim = 32
    output_dim = 8

    kx, kp, kx2 = jax.random.split(key, 3)
    x = jax.random.normal(kx, (batch, seq_len, enc_in), dtype=jnp.float32)
    w1, b1, w2, b2 = init_params(kp, input_dim, hidden_dim, output_dim)

    # one-time weight prep (layer fold + pad + bf16 cast), outside the hot path
    w_p, b_p = prepare_params(w1, b1, w2, b2)

    out = nn_forward(x, w_p, b_p, output_dim)
    out = jax.block_until_ready(out)
    assert out.shape == (batch, 1, output_dim), out.shape

    # dtype-matched reference (folded weights, bf16 operands, f32 accumulation)
    x2d = x.reshape(batch, -1)
    w_eff = w1 @ w2
    b_eff = b1 @ w2 + b2
    ref_match = (jnp.dot(x2d.astype(jnp.bfloat16), w_eff.astype(jnp.bfloat16),
                         preferred_element_type=jnp.float32) + b_eff)[:, None, :]
    assert jnp.allclose(out, ref_match, atol=1e-3, rtol=1e-3), (
        jnp.max(jnp.abs(out - ref_match)))

    # loose sanity check against the unfolded full-f32 reference
    ref_f32 = ((x2d @ w1 + b1) @ w2 + b2)[:, None, :]
    assert jnp.allclose(out, ref_f32, atol=5e-2, rtol=5e-2), (
        jnp.max(jnp.abs(out - ref_f32)))

    # larger batch: exercises batch padding and the >=2-grid-step (megacore) path
    batch2 = 1200
    x_big = jax.random.normal(kx2, (batch2, seq_len, enc_in), dtype=jnp.float32)
    out_big = jax.block_until_ready(nn_forward(x_big, w_p, b_p, output_dim))
    assert out_big.shape == (batch2, 1, output_dim), out_big.shape
    x2d_big = x_big.reshape(batch2, -1)
    ref_big = ((x2d_big @ w1 + b1) @ w2 + b2)[:, None, :]
    assert jnp.allclose(out_big, ref_big, atol=5e-2, rtol=5e-2), (
        jnp.max(jnp.abs(out_big - ref_big)))

    print("KERNEL_OK")
</pallas_src>

<mosaic_0001>
module attributes {stable_mosaic.version = 11 : i64} {
  func.func @_nn_kernel(%arg0: i32, %arg1: memref<2x32xf32, #tpu.memory_space<vmem>>, %arg2: memref<32x128xbf16, #tpu.memory_space<vmem>>, %arg3: memref<1x128xf32, #tpu.memory_space<vmem>>, %arg4: memref<2x8xf32, #tpu.memory_space<vmem>>) attributes {dimension_semantics = [#tpu.dimension_semantics<parallel>], iteration_bounds = array<i64: 1>, scalar_prefetch = 0 : i64, scratch_operands = 0 : i64, tpu.core_type = #tpu.core_type<tc>, window_params = [{transform_indices = @transform_0, window_bounds = array<i64: 2, 32>}, {pipeline_mode = #tpu.pipeline_mode<synchronous>, transform_indices = @transform_1, window_bounds = array<i64: 32, 128>}, {pipeline_mode = #tpu.pipeline_mode<synchronous>, transform_indices = @transform_2, window_bounds = array<i64: 1, 128>}, {transform_indices = @transform_3, window_bounds = array<i64: 2, 8>}]} {
    %c0 = arith.constant 0 : index
    %c0_0 = arith.constant 0 : index
    %0 = vector.load %arg1[%c0, %c0_0] : memref<2x32xf32, #tpu.memory_space<vmem>>, vector<2x32xf32>
    %1 = arith.truncf %0 : vector<2x32xf32> to vector<2x32xbf16>
    %c0_1 = arith.constant 0 : index
    %c0_2 = arith.constant 0 : index
    %2 = vector.load %arg2[%c0_1, %c0_2] : memref<32x128xbf16, #tpu.memory_space<vmem>>, vector<32x128xbf16>
    %cst = arith.constant dense<0.000000e+00> : vector<2x128xf32>
    %3 = tpu.matmul %1, %2, %cst {dimension_numbers = #tpu.dot_dimension_numbers<[1], [0], [0], [1], [0, 0, 1, 1], [], []>} : vector<2x32xbf16>, vector<32x128xbf16>, vector<2x128xf32> -> vector<2x128xf32>
    %c0_3 = arith.constant 0 : index
    %c0_4 = arith.constant 0 : index
    %4 = vector.load %arg3[%c0_3, %c0_4] : memref<1x128xf32, #tpu.memory_space<vmem>>, vector<1x128xf32>
    %5 = vector.broadcast %4 : vector<1x128xf32> to vector<2x128xf32>
    %6 = arith.addf %3, %5 : vector<2x128xf32>
    %7 = vector.extract_strided_slice %6 {offsets = [0, 0], sizes = [2, 8], strides = [1, 1]} : vector<2x128xf32> to vector<2x8xf32>
    %c0_5 = arith.constant 0 : index
    %c0_6 = arith.constant 0 : index
    %8 = vector.load %arg4[%c0_5, %c0_6] : memref<2x8xf32, #tpu.memory_space<vmem>>, vector<2x8xf32>
    tpu.vector_store %arg4[%c0_5, %c0_6], %7 {strides = array<i32>} : memref<2x8xf32, #tpu.memory_space<vmem>>, vector<2x8xf32>,
    return
  }
  func.func @transform_0(%arg0: i32) -> (i32, i32) {
    %c0_i32 = arith.constant 0 : i32
    %c0_i32_0 = arith.constant 0 : i32
    return %arg0, %c0_i32 : i32, i32
  }
  func.func @transform_1(%arg0: i32) -> (i32, i32) {
    %c0_i32 = arith.constant 0 : i32
    %c0_i32_0 = arith.constant 0 : i32
    %c0_i32_1 = arith.constant 0 : i32
    return %c0_i32, %c0_i32_0 : i32, i32
  }
  func.func @transform_2(%arg0: i32) -> (i32, i32) {
    %c0_i32 = arith.constant 0 : i32
    %c0_i32_0 = arith.constant 0 : i32
    %c0_i32_1 = arith.constant 0 : i32
    return %c0_i32, %c0_i32_0 : i32, i32
  }
  func.func @transform_3(%arg0: i32) -> (i32, i32) {
    %c0_i32 = arith.constant 0 : i32
    %c0_i32_0 = arith.constant 0 : i32
    return %arg0, %c0_i32 : i32, i32
  }
}

</mosaic_0001>

<llo_original>
// kernel: tpu_custom_call.1
$region0: #{tpu_custom_call.1}
  #allocation0 [shape = 'u32[]', space=smem, size = 0x4, offset = 0x4, fixed_abs, tag = 'smem constant byte address 0x4 - core index']
  #allocation1 [shape = 'u32[144,128]{1,0:T(1,128)}', space=vmem, size = 0x12000, scoped, tag = 'internal scratch']
  %s0 = inlined_call_operand.hbm [shape: f32[2,32], index: 0, kind: input, shape index: {}]
  %s1 = inlined_call_operand.hbm [shape: bf16[32,128], index: 1, kind: input, shape index: {}]
  %s2 = inlined_call_operand.vmem [shape: f32[1,128], index: 2, kind: input, shape index: {}]
  %s3 = inlined_call_operand.hbm [shape: f32[2,8], index: 3, kind: output, shape index: {}]
  %s4 = sld [smem:[#allocation0]]
  $region30: #{tpu_custom_call.1} parent=0
    _
  %s6 = ssub.s32 1, %s4
  %s7 = scalar_select 0, %s6, %s4
  $region1: #{tpu_custom_call.1} parent=0
    #allocation2 [shape = 'u8[1024]{0}', space=vmem, size = 0x400, scoped, tag = 'input window, operand 0, single buffered']
    #allocation3 [shape = 's32[1]{0}', space=sflag, size = 0x4, scoped, tag = 'scoped memory for tpu_custom_call.1']
    #allocation4 [shape = 's32[1]{0}', space=sflag, size = 0x4, scoped, tag = 'scoped memory for tpu_custom_call.1']
    #allocation5 [shape = 'u8[8192]{0}', space=vmem, size = 0x2000, scoped, tag = 'input window, operand 1, single buffered']
    #allocation6 [shape = 's32[1]{0}', space=sflag, size = 0x4, scoped, tag = 'scoped memory for tpu_custom_call.1']
    #allocation7 [shape = 'u8[1024]{0}', space=vmem, size = 0x400, scoped, tag = 'output window, operand 0, single buffered']
    %8 = vsyncpa [#allocation3], 0
    %9 = vsyncpa [#allocation6], 0
    %10 = vsyncpa [#allocation4], 0
    // Predicated region
    $region2: #{tpu_custom_call.1} parent=1 // pred_check
      _
    $region3: #{tpu_custom_call.1} parent=1 // pred_check_branch
      %12 = sbr.rel (0) target = $region5
    $region4: #{tpu_custom_call.1} parent=1 // pred_region
      %s14 = ssub.s32 32, 32
      %15 = vsyncadd [#allocation3], %s14
      %s17 = sshll.u32 [#allocation2], 4
      %s18 = int_to_ptr.vmem [resolvable:$true] %s17
      %20 = dma.hbm_to_vmem [thread:$0]  %s0, 32, %s18, [#allocation3]
    $region5: #{tpu_custom_call.1} parent=1 // pred_fallthru
      _
    // Predicated region
    $region6: #{tpu_custom_call.1} parent=1 // pred_check
      _
    $region7: #{tpu_custom_call.1} parent=1 // pred_check_branch
      %22 = sbr.rel (0) target = $region9
    $region8: #{tpu_custom_call.1} parent=1 // pred_region
      %s24 = ssub.s32 256, 256
      %25 = vsyncadd [#allocation6], %s24
      %s26 = sshll.u32 [#allocation5], 4
      %s27 = int_to_ptr.vmem [resolvable:$true] %s26
      %32 = dma.hbm_to_vmem [thread:$0]  %s1, 256, %s27, [#allocation6], 64, 64, 4
    $region9: #{tpu_custom_call.1} parent=1 // pred_fallthru
      _
    // Predicated region
    $region10: #{tpu_custom_call.1} parent=1 // pred_check
      _
    $region11: #{tpu_custom_call.1} parent=1 // pred_check_branch
      %34 = sbr.rel (0) target = $region13
    $region12: #{tpu_custom_call.1} parent=1 // pred_region
      _
    $region13: #{tpu_custom_call.1} parent=1 // pred_fallthru
      _
    // Predicated region
    $region14: #{tpu_custom_call.1} parent=1 // pred_check
      _
    $region15: #{tpu_custom_call.1} parent=1 // pred_check_branch
      %36 = sbr.rel (0) target = $region17
    $region16: #{tpu_custom_call.1} parent=1 // pred_region
      %37 = dma.done [#allocation3], 32
    $region17: #{tpu_custom_call.1} parent=1 // pred_fallthru
      _
    // Predicated region
    $region18: #{tpu_custom_call.1} parent=1 // pred_check
      _
    $region19: #{tpu_custom_call.1} parent=1 // pred_check_branch
      %39 = sbr.rel (0) target = $region21
    $region20: #{tpu_custom_call.1} parent=1 // pred_region
      %40 = dma.done [#allocation6], 256
    $region21: #{tpu_custom_call.1} parent=1 // pred_fallthru
      _
    %v42 = vld [vmem:[#allocation2] sm:$0x3]
    %v43 = vpack.c.bf16 %v42, %v42
    %v44 = vld [vmem:[#allocation5] sm:$0xf]
    %v45 = vld [vmem:[#allocation5 + $0x4] sm:$0xf]
    %v46 = vld [vmem:[#allocation5 + $0x8] sm:$0xf]
    %v47 = vld [vmem:[#allocation5 + $0xc] sm:$0xf]
    %v48 = vld [vmem:[%s2] sm:$0x1]
    %v50 = vlaneseq
    %v51 = vshrl.u32 %v50, 7
    %v52 = vsub.s32 0, %v51
    %v53 = vrot.slane %v48, %v52
    %v59 = vunpack.c.l.b16 %v44
    %v60 = vunpack.c.l.b16 %v45
    %v61 = vunpack.c.l.b16 %v46
    %v62 = vunpack.c.l.b16 %v47
    %v63 = vpack.c.b16 %v60, %v59
    %v64 = vpack.c.b16 %v62, %v61
    %vm67 = vcmask 261120
    %v69 = vsel %vm67, %v43, 0
    %71 = vmatprep.subr.bf16.mxu0 0
    %72 = vmatpush1.bf16.msra.mxu0 %v63
    %73 = vmatprep.subr.bf16.mxu0 0
    %74 = vmatpush1.bf16.msra.mxu0 %v64
    %75 = vmatprep.subr.bf16.mxu0 0
    %76 = vmatpush1.bf16.msra.mxu0 0
    %77 = vmatprep.subr.bf16.mxu0 0
    %78 = vmatpush1.bf16.msra.mxu0 0
    %79 = vmatprep.subr.bf16.mxu0 0
    %80 = vmatpush1.bf16.msra.mxu0 0
    %81 = vmatprep.subr.bf16.mxu0 0
    %82 = vmatpush1.bf16.msra.mxu0 0
    %83 = vmatprep.subr.bf16.mxu0 0
    %84 = vmatpush1.bf16.msra.mxu0 0
    %85 = vmatprep.subr.bf16.mxu0 0
    %86 = vmatpush1.bf16.msra.mxu0 0
    %87 = vmatprep.subr.bf16.mxu0 0
    %88 = vmatpush1.bf16.msra.mxu0 0
    %89 = vmatprep.subr.bf16.mxu0 0
    %90 = vmatpush1.bf16.msra.mxu0 0
    %91 = vmatprep.subr.bf16.mxu0 0
    %92 = vmatpush1.bf16.msra.mxu0 0
    %93 = vmatprep.subr.bf16.mxu0 0
    %94 = vmatpush1.bf16.msra.mxu0 0
    %95 = vmatprep.subr.bf16.mxu0 0
    %96 = vmatpush1.bf16.msra.mxu0 0
    %97 = vmatprep.subr.bf16.mxu0 0
    %98 = vmatpush1.bf16.msra.mxu0 0
    %99 = vmatprep.subr.bf16.mxu0 0
    %100 = vmatpush1.bf16.msra.mxu0 0
    %101 = vmatprep.subr.bf16.mxu0 0
    %102 = vmatpush1.bf16.msra.mxu0 0
    %103 = vmatprep.mubr.bf16.mxu0 0
    %104 = vmatmul.mubr.bf16.gmra.mrb[0].mxu0 %v69
    %v105 = vpop.f32.mrb[0].mxu0
    %v106 = vadd.f32 %v53, %v105
    %v107 = vpop.f32.mrb[0].mxu0
    %v108 = vpop.f32.mrb[0].mxu0
    %v109 = vpop.f32.mrb[0].mxu0
    %110 = vdwg.mxu0
    %vm111 = vcmask 58368
    %112 = vst.msk [vmem:[#allocation7] sm:$0x3] %vm111, %v106
    // Predicated region
    $region22: #{tpu_custom_call.1} parent=1 // pred_check
      _
    $region23: #{tpu_custom_call.1} parent=1 // pred_check_branch
      %114 = sbr.rel (0) target = $region25
    $region24: #{tpu_custom_call.1} parent=1 // pred_region
      %s116 = ssub.s32 32, 32
      %117 = vsyncadd [#allocation4], %s116
      %s119 = sshll.u32 [#allocation7], 4
      %s120 = int_to_ptr.vmem [resolvable:$true] %s119
      %122 = dma.vmem_to_hbm [thread:$0]  %s120, 32, %s3, [#allocation4]
    $region25: #{tpu_custom_call.1} parent=1 // pred_fallthru
      _
    // Predicated region
    $region26: #{tpu_custom_call.1} parent=1 // pred_check
      _
    $region27: #{tpu_custom_call.1} parent=1 // pred_check_branch
      %124 = sbr.rel (0) target = $region29
    $region28: #{tpu_custom_call.1} parent=1 // pred_region
      %125 = dma.done [#allocation4], 32
    $region29: #{tpu_custom_call.1} parent=1 // pred_fallthru
      _
    %126 = vsyncpa [#allocation3], 1
    %127 = vsyncpa [#allocation6], 1
    %128 = vsyncpa [#allocation4], 1

</llo_original>
